<compile_context>
chip_gen: v7x
topology: tpu7x:2x2x1
jax: 0.10.0
libtpu: 0.0.40
codegen_flags: <defaults>
</compile_context>

<pallas_src>
import jax
import jax.numpy as jnp
from jax.experimental import pallas as pl
from jax.experimental.pallas import tpu as pltpu

LANES = 128                 # lane width of a vreg
MAX_ROW_TILE = 4096         # rows of 128 lanes per grid step (multiple of 8)


def linear_kernel(w_ref, b_ref, x_ref, o_ref):
    # w_ref: SMEM (K,) f32        b_ref: SMEM (1,) f32
    # x_ref: VMEM (K, R_TILE, 128) f32 (dense slabs, one per input feature)
    # o_ref: VMEM (R_TILE, 128) f32    (dense slab)
    k_dim = x_ref.shape[0]
    acc = x_ref[0] * w_ref[0]                    # (R_TILE, 128) VPU work
    for k in range(1, k_dim):                    # K=3 -> statically unrolled
        acc = acc + x_ref[k] * w_ref[k]
    o_ref[...] = acc + b_ref[0]


def _round_up(a, m):
    return ((a + m - 1) // m) * m


def multivariate_linear_regression(x, weight, bias):
    """x: (B, 3) f32, weight: (1, 3) f32, bias: (1,) f32 -> (B, 1) f32."""
    B, K = x.shape
    N = weight.shape[0]
    assert N == 1 and weight.shape[1] == K

    # Batch -> (R, 128) dense slabs.
    b_padded = _round_up(B, LANES)
    R = b_padded // LANES
    # r_tile is either a multiple of 8 (MAX_ROW_TILE) or equals the full row
    # extent R, so the (8,128) BlockSpec constraint is always satisfied.
    r_tile = min(MAX_ROW_TILE, R)

    # Single fused relayout pass: pad ragged batch tail to a lane multiple,
    # transpose features out front, view as (K, R, 128) slabs.  XLA fuses the
    # pad+transpose into one copy; the reshape is free (row-major).
    # TODO(synk): if the caller can produce x already in (K, R, 128) slab
    # layout, pass it straight through and skip this copy entirely.
    x_slab = jnp.pad(x, ((0, b_padded - B), (0, 0))).T.reshape(K, R, LANES)

    w_flat = weight.reshape(-1).astype(jnp.float32)   # (K,)
    b_flat = bias.reshape(-1).astype(jnp.float32)     # (1,)

    out_slab = pl.pallas_call(
        linear_kernel,
        out_shape=jax.ShapeDtypeStruct((R, LANES), jnp.float32),
        grid=(pl.cdiv(R, r_tile),),
        in_specs=[
            pl.BlockSpec(memory_space=pltpu.MemorySpace.SMEM),        # weights (K,)
            pl.BlockSpec(memory_space=pltpu.MemorySpace.SMEM),        # bias (1,)
            pl.BlockSpec((K, r_tile, LANES), lambda i: (0, i, 0)),    # x slab tile
        ],
        out_specs=pl.BlockSpec((r_tile, LANES), lambda i: (i, 0)),    # out slab tile
        compiler_params=pltpu.CompilerParams(
            # Independent batch-row axis: shards across the 2 TCs on v7x.
            dimension_semantics=("parallel",),
            # Explicit budget: ~16 MiB live (double-buffered 6 MiB in + 2 MiB out)
            # fits comfortably on v5e/v6e (128 MiB) and v7x (64 MiB).
            vmem_limit_bytes=32 * 1024 * 1024,
        ),
    )(w_flat, b_flat, x_slab)

    # Dense slab -> (B, 1): pure reshape + slice (no transpose pass).
    return out_slab.reshape(b_padded)[:B].reshape(B, N)


if __name__ == "__main__":
    key = jax.random.PRNGKey(0)
    kx, kw, kb = jax.random.split(key, 3)

    B, IN_FEATURES, OUT_FEATURES = 8, 3, 1

    # Deterministic init mimicking nn.Linear's U(-1/sqrt(fan_in), 1/sqrt(fan_in)).
    bound = 1.0 / jnp.sqrt(jnp.float32(IN_FEATURES))
    weight = jax.random.uniform(kw, (OUT_FEATURES, IN_FEATURES),
                                minval=-bound, maxval=bound, dtype=jnp.float32)
    bias = jax.random.uniform(kb, (OUT_FEATURES,),
                              minval=-bound, maxval=bound, dtype=jnp.float32)
    x = jax.random.normal(kx, (B, IN_FEATURES), dtype=jnp.float32)

    fwd = jax.jit(multivariate_linear_regression)
    out = jax.block_until_ready(fwd(x, weight, bias))

    # Correctness check against plain-JAX reference.
    ref = x @ weight.T + bias
    assert out.shape == (B, OUT_FEATURES)
    assert jnp.allclose(out, ref, atol=1e-5, rtol=1e-5), "mismatch vs reference"

    print("KERNEL_OK")
</pallas_src>

<mosaic_0001>
module attributes {stable_mosaic.version = 11 : i64} {
  func.func @linear_kernel(%arg0: i32, %arg1: memref<3xf32, #tpu.memory_space<smem>>, %arg2: memref<1xf32, #tpu.memory_space<smem>>, %arg3: memref<3x1x128xf32, #tpu.memory_space<vmem>>, %arg4: memref<1x128xf32, #tpu.memory_space<vmem>>) attributes {dimension_semantics = [#tpu.dimension_semantics<parallel>], iteration_bounds = array<i64: 1>, scalar_prefetch = 0 : i64, scratch_operands = 0 : i64, tpu.core_type = #tpu.core_type<tc>, window_params = [{transform_indices = @transform_0, window_bounds = array<i64: 3>}, {transform_indices = @transform_1, window_bounds = array<i64: 1>}, {transform_indices = @transform_2, window_bounds = array<i64: 3, 1, 128>}, {transform_indices = @transform_3, window_bounds = array<i64: 1, 128>}]} {
    %c0 = arith.constant 0 : index
    %c0_0 = arith.constant 0 : index
    %c0_1 = arith.constant 0 : index
    %0 = vector.load %arg3[%c0, %c0_0, %c0_1] : memref<3x1x128xf32, #tpu.memory_space<vmem>>, vector<1x1x128xf32>
    %1 = vector.shape_cast %0 : vector<1x1x128xf32> to vector<1x128xf32>
    %c0_2 = arith.constant 0 : index
    %2 = memref.load %arg1[%c0_2] : memref<3xf32, #tpu.memory_space<smem>>
    %3 = vector.broadcast %2 : f32 to vector<1x128xf32>
    %4 = arith.mulf %1, %3 : vector<1x128xf32>
    %c1 = arith.constant 1 : index
    %c0_3 = arith.constant 0 : index
    %c0_4 = arith.constant 0 : index
    %5 = vector.load %arg3[%c1, %c0_3, %c0_4] : memref<3x1x128xf32, #tpu.memory_space<vmem>>, vector<1x1x128xf32>
    %6 = vector.shape_cast %5 : vector<1x1x128xf32> to vector<1x128xf32>
    %c1_5 = arith.constant 1 : index
    %7 = memref.load %arg1[%c1_5] : memref<3xf32, #tpu.memory_space<smem>>
    %8 = vector.broadcast %7 : f32 to vector<1x128xf32>
    %9 = arith.mulf %6, %8 : vector<1x128xf32>
    %10 = arith.addf %4, %9 : vector<1x128xf32>
    %c2 = arith.constant 2 : index
    %c0_6 = arith.constant 0 : index
    %c0_7 = arith.constant 0 : index
    %11 = vector.load %arg3[%c2, %c0_6, %c0_7] : memref<3x1x128xf32, #tpu.memory_space<vmem>>, vector<1x1x128xf32>
    %12 = vector.shape_cast %11 : vector<1x1x128xf32> to vector<1x128xf32>
    %c2_8 = arith.constant 2 : index
    %13 = memref.load %arg1[%c2_8] : memref<3xf32, #tpu.memory_space<smem>>
    %14 = vector.broadcast %13 : f32 to vector<1x128xf32>
    %15 = arith.mulf %12, %14 : vector<1x128xf32>
    %16 = arith.addf %10, %15 : vector<1x128xf32>
    %c0_9 = arith.constant 0 : index
    %17 = memref.load %arg2[%c0_9] : memref<1xf32, #tpu.memory_space<smem>>
    %18 = vector.broadcast %17 : f32 to vector<1x128xf32>
    %19 = arith.addf %16, %18 : vector<1x128xf32>
    %c0_10 = arith.constant 0 : index
    %c0_11 = arith.constant 0 : index
    %20 = vector.load %arg4[%c0_10, %c0_11] : memref<1x128xf32, #tpu.memory_space<vmem>>, vector<1x128xf32>
    tpu.vector_store %arg4[%c0_10, %c0_11], %19 {strides = array<i32>} : memref<1x128xf32, #tpu.memory_space<vmem>>, vector<1x128xf32>,
    return
  }
  func.func @transform_0(%arg0: i32) -> i32 {
    %c0_i32 = arith.constant 0 : i32
    %c0_i32_0 = arith.constant 0 : i32
    return %c0_i32 : i32
  }
  func.func @transform_1(%arg0: i32) -> i32 {
    %c0_i32 = arith.constant 0 : i32
    %c0_i32_0 = arith.constant 0 : i32
    return %c0_i32 : i32
  }
  func.func @transform_2(%arg0: i32) -> (i32, i32, i32) {
    %c0_i32 = arith.constant 0 : i32
    %c0_i32_0 = arith.constant 0 : i32
    %c0_i32_1 = arith.constant 0 : i32
    return %c0_i32, %arg0, %c0_i32_0 : i32, i32, i32
  }
  func.func @transform_3(%arg0: i32) -> (i32, i32) {
    %c0_i32 = arith.constant 0 : i32
    %c0_i32_0 = arith.constant 0 : i32
    return %arg0, %c0_i32 : i32, i32
  }
}

</mosaic_0001>

<llo_original>
// kernel: multivariate_linear_regression.1
$region0: #{multivariate_linear_regression.1}
  #allocation0 [shape = 'u32[]', space=smem, size = 0x4, offset = 0x4, fixed_abs, tag = 'smem constant byte address 0x4 - core index']
  #allocation1 [shape = 'u32[144,128]{1,0:T(1,128)}', space=vmem, size = 0x12000, scoped, tag = 'internal scratch']
  #allocation2 [shape = 'f32[1]{0:T(128)S(6)}', space=smem, size = 0x200, scoped, tag = 'scoped memory for multivariate_linear_regression.1']
  %s0 = inlined_call_operand.vmem [shape: f32[3], index: 0, kind: input, shape index: {}]
  %s1 = inlined_call_operand.<no memory space> [shape: f32[1], index: 1, kind: input, shape index: {}]
  %s2 = inlined_call_operand.vmem [shape: f32[3,1,128], index: 2, kind: input, shape index: {}]
  %s3 = inlined_call_operand.vmem [shape: f32[1,128], index: 3, kind: output, shape index: {}]
  %s4 = sld [smem:[#allocation0]]
  $region26: #{multivariate_linear_regression.1} parent=0
    _
  %s6 = ssub.s32 1, %s4
  %s7 = scalar_select 0, %s6, %s4
  %8 = sst [smem:[#allocation2]] %s1
  $region1: #{multivariate_linear_regression.1} parent=0
    #allocation3 [shape = 'u8[512]{0}', space=smem, size = 0x200, scoped, tag = 'input window, operand 0, single buffered']
    #allocation4 [shape = 's32[1]{0}', space=sflag, size = 0x4, scoped, tag = 'scoped memory for multivariate_linear_regression.1']
    %9 = vsyncpa [#allocation4], 0
    // Predicated region
    $region2: #{multivariate_linear_regression.1} parent=1 // pred_check
      _
    $region3: #{multivariate_linear_regression.1} parent=1 // pred_check_branch
      %11 = sbr.rel (0) target = $region5
    $region4: #{multivariate_linear_regression.1} parent=1 // pred_region
      %s13 = ssub.s32 16, 16
      %14 = vsyncadd [#allocation4], %s13
      %s16 = sshll.u32 %s0, 4
      %s17 = int_to_ptr.vmem [resolvable:$true] %s16
      %19 = dma.vmem_to_smem %s17, 16, [#allocation3], [#allocation4]
    $region5: #{multivariate_linear_regression.1} parent=1 // pred_fallthru
      _
    // Predicated region
    $region6: #{multivariate_linear_regression.1} parent=1 // pred_check
      _
    $region7: #{multivariate_linear_regression.1} parent=1 // pred_check_branch
      %21 = sbr.rel (0) target = $region9
    $region8: #{multivariate_linear_regression.1} parent=1 // pred_region
      _
    $region9: #{multivariate_linear_regression.1} parent=1 // pred_fallthru
      _
    // Predicated region
    $region10: #{multivariate_linear_regression.1} parent=1 // pred_check
      _
    $region11: #{multivariate_linear_regression.1} parent=1 // pred_check_branch
      %23 = sbr.rel (0) target = $region13
    $region12: #{multivariate_linear_regression.1} parent=1 // pred_region
      _
    $region13: #{multivariate_linear_regression.1} parent=1 // pred_fallthru
      _
    // Predicated region
    $region14: #{multivariate_linear_regression.1} parent=1 // pred_check
      _
    $region15: #{multivariate_linear_regression.1} parent=1 // pred_check_branch
      %25 = sbr.rel (0) target = $region17
    $region16: #{multivariate_linear_regression.1} parent=1 // pred_region
      %26 = dma.done [#allocation4], 16
    $region17: #{multivariate_linear_regression.1} parent=1 // pred_fallthru
      _
    %27 = sfence
    %v28 = vld [vmem:[%s2] sm:$0x1]
    %s29 = sld [smem:[#allocation3]]
    %v30 = vstv %s29
    %v31 = vmul.f32 %v28, %v30
    %s32 = scalar_lea.vmem %s2, 1
    %v33 = vld [vmem:[%s32] sm:$0x1]
    %s34 = sld [smem:[#allocation3 + $0x1]]
    %v35 = vstv %s34
    %v36 = vmul.f32 %v33, %v35
    %v37 = vadd.f32 %v31, %v36
    %s38 = scalar_lea.vmem %s2, 2
    %v39 = vld [vmem:[%s38] sm:$0x1]
    %s40 = sld [smem:[#allocation3 + $0x2]]
    %v41 = vstv %s40
    %v42 = vmul.f32 %v39, %v41
    %v43 = vadd.f32 %v37, %v42
    %s44 = sld [smem:[#allocation2]]
    %v45 = vstv %s44
    %v46 = vadd.f32 %v43, %v45
    %47 = vst [vmem:[%s3] sm:$0x1] %v46
    // Predicated region
    $region18: #{multivariate_linear_regression.1} parent=1 // pred_check
      _
    $region19: #{multivariate_linear_regression.1} parent=1 // pred_check_branch
      %49 = sbr.rel (0) target = $region21
    $region20: #{multivariate_linear_regression.1} parent=1 // pred_region
      _
    $region21: #{multivariate_linear_regression.1} parent=1 // pred_fallthru
      _
    // Predicated region
    $region22: #{multivariate_linear_regression.1} parent=1 // pred_check
      _
    $region23: #{multivariate_linear_regression.1} parent=1 // pred_check_branch
      %51 = sbr.rel (0) target = $region25
    $region24: #{multivariate_linear_regression.1} parent=1 // pred_region
      _
    $region25: #{multivariate_linear_regression.1} parent=1 // pred_fallthru
      _
    %52 = vsyncpa [#allocation4], 1

</llo_original>
